<compile_context>
chip_gen: v6e
topology: v6e:2x2x1
jax: 0.10.0
libtpu: 0.0.40
codegen_flags: <defaults>
</compile_context>

<pallas_src>
import jax
import jax.numpy as jnp
from jax import lax
from jax.experimental import pallas as pl
from jax.experimental.pallas import tpu as pltpu

BN_EPS = 1e-5


def _vanishing_residual_kernel(x_ref, w1_ref, w2_ref, pp_ref, o_ref):
    # x stays f32 for the residual path / BN math; bf16 copy feeds the MXU.
    x = x_ref[...]
    x_bf = x.astype(jnp.bfloat16)

    # Packed per-feature BN params, loaded once and sliced as a value.
    # Rows: [gamma1, beta1, gamma2, beta2].
    pp = pp_ref[...]                       # (4, F) f32
    g1, beta1 = pp[0:1, :], pp[1:2, :]
    g2, beta2 = pp[2:3, :], pp[3:4, :]

    # ---- fc1: x @ W1t on the MXU. W1t is (in, out): contract lhs dim 1 with
    # rhs dim 0 -> clean (M,K)x(K,N) lowering, no in-kernel transpose.
    h = lax.dot_general(
        x_bf, w1_ref[...],
        dimension_numbers=(((1,), (0,)), ((), ())),
        preferred_element_type=jnp.float32)

    # ---- bn1 (training-mode, biased batch variance) folded into one FMA + ReLU.
    mean1 = jnp.mean(h, axis=0, keepdims=True)
    hc1 = h - mean1
    var1 = jnp.mean(hc1 * hc1, axis=0, keepdims=True)
    scale1 = g1 * lax.rsqrt(var1 + BN_EPS)          # rsqrt -> EUP slot
    h = jnp.maximum(hc1 * scale1 + beta1, 0.0)      # BN affine + ReLU

    # ---- fc2: h @ W2t (bf16 operands, f32 accumulation).
    h2 = lax.dot_general(
        h.astype(jnp.bfloat16), w2_ref[...],
        dimension_numbers=(((1,), (0,)), ((), ())),
        preferred_element_type=jnp.float32)

    # ---- bn2 folded, then residual add + end ReLU.
    mean2 = jnp.mean(h2, axis=0, keepdims=True)
    hc2 = h2 - mean2
    var2 = jnp.mean(hc2 * hc2, axis=0, keepdims=True)
    scale2 = g2 * lax.rsqrt(var2 + BN_EPS)
    o_ref[...] = jnp.maximum(hc2 * scale2 + beta2 + x, 0.0).astype(o_ref.dtype)


def prepare_params(params):
    """One-time preprocessing, deliberately OFF the per-call critical path:
      * transpose Linear weights to (in, out) and cast to bf16,
      * pack gamma1/beta1/gamma2/beta2 into a single (4, F) f32 array.
    Linear biases are dropped: training-mode BN cancels them exactly."""
    w1_t = params["w1"].T.astype(jnp.bfloat16)       # (in, out) bf16
    w2_t = params["w2"].T.astype(jnp.bfloat16)       # (in, out) bf16
    packed_bn = jnp.stack(
        [params["gamma1"], params["beta1"], params["gamma2"], params["beta2"]],
        axis=0).astype(jnp.float32)                  # (4, F)
    return w1_t, w2_t, packed_bn


def vanishing_residual_block(x, w1_t_bf16, w2_t_bf16, packed_bn):
    """x: (B, F) float32; weights bf16 (in, out); packed_bn: (4, F) float32."""
    B, F = x.shape

    def full(a):
        return pl.BlockSpec(a.shape, lambda: (0,) * a.ndim)

    # Byte/flop accounting for the scheduler hint and the VMEM limit.
    weight_bytes = int(w1_t_bf16.nbytes + w2_t_bf16.nbytes)
    io_bytes = int(x.nbytes) * 2 + int(packed_bn.nbytes)   # x in + out + BN
    resident_bytes = weight_bytes + io_bytes
    # Headroom for intermediates / double-buffering; keep within the default
    # scoped limits at toy size and never above v7x's 64 MiB physical VMEM.
    vmem_limit = min(max(6 * resident_bytes, 32 << 20), 64 << 20)

    cost = pl.CostEstimate(
        flops=4 * B * F * F,           # two (B,F)x(F,F) matmuls
        transcendentals=2 * F,         # two per-feature rsqrt vectors
        bytes_accessed=resident_bytes,
    )

    return pl.pallas_call(
        _vanishing_residual_kernel,
        out_shape=jax.ShapeDtypeStruct((B, F), x.dtype),
        grid=(),
        in_specs=[full(x), full(w1_t_bf16), full(w2_t_bf16), full(packed_bn)],
        out_specs=pl.BlockSpec((B, F), lambda: (0, 0)),
        cost_estimate=cost,
        compiler_params=pltpu.CompilerParams(vmem_limit_bytes=vmem_limit),
    )(x, w1_t_bf16, w2_t_bf16, packed_bn)


def _reference(x, params):
    """Pure-JAX f32 reference mirroring the PyTorch forward (training-mode BN,
    including the Linear biases, which BN cancels mathematically)."""
    def bn(h, g, b):
        m = jnp.mean(h, axis=0, keepdims=True)
        v = jnp.mean((h - m) ** 2, axis=0, keepdims=True)
        return (h - m) / jnp.sqrt(v + BN_EPS) * g + b

    h = x @ params["w1"].T + params["b1"]
    h = jnp.maximum(bn(h, params["gamma1"], params["beta1"]), 0.0)
    h = h @ params["w2"].T + params["b2"]
    h = bn(h, params["gamma2"], params["beta2"])
    return jnp.maximum(h + x, 0.0)


if __name__ == "__main__":
    # B=128 fills the MXU M dimension and amortizes weight DMA + launch
    # overhead (per perf review); F=128 matches the module's in_features.
    B, F = 128, 128

    key = jax.random.PRNGKey(0)
    kx, kw1, kb1, kw2, kb2, kg1, kbt1, kg2, kbt2 = jax.random.split(key, 9)

    x = jax.random.normal(kx, (B, F), dtype=jnp.float32)

    bound = 1.0 / jnp.sqrt(F)
    params = {
        # nn.Linear-style synthetic init, deterministic.
        "w1": jax.random.uniform(kw1, (F, F), jnp.float32, -bound, bound),
        "b1": jax.random.uniform(kb1, (F,), jnp.float32, -bound, bound),
        "w2": jax.random.uniform(kw2, (F, F), jnp.float32, -bound, bound),
        "b2": jax.random.uniform(kb2, (F,), jnp.float32, -bound, bound),
        # BatchNorm affine params, perturbed from (1, 0) so the path is exercised.
        "gamma1": 1.0 + 0.1 * jax.random.normal(kg1, (F,), jnp.float32),
        "beta1": 0.1 * jax.random.normal(kbt1, (F,), jnp.float32),
        "gamma2": 1.0 + 0.1 * jax.random.normal(kg2, (F,), jnp.float32),
        "beta2": 0.1 * jax.random.normal(kbt2, (F,), jnp.float32),
    }

    # One-time weight prep (transpose + bf16 cast + BN packing), off the hot path.
    w1t, w2t, packed_bn = prepare_params(params)

    out = jax.block_until_ready(vanishing_residual_block(x, w1t, w2t, packed_bn))
    ref = jax.block_until_ready(_reference(x, params))

    assert out.shape == (B, F) and out.dtype == jnp.float32
    # Tolerance reflects bf16 MXU operands vs. a pure-f32 reference; training-mode
    # BN divides by per-channel batch stds and can amplify that rounding.
    assert jnp.allclose(out, ref, atol=1e-1, rtol=1e-1), float(
        jnp.max(jnp.abs(out - ref)))
    print("KERNEL_OK")
</pallas_src>

<mosaic_0001>
module attributes {stable_mosaic.version = 11 : i64} {
  func.func @_vanishing_residual_kernel(%arg0: memref<128x128xf32, #tpu.memory_space<vmem>>, %arg1: memref<128x128xbf16, #tpu.memory_space<vmem>>, %arg2: memref<128x128xbf16, #tpu.memory_space<vmem>>, %arg3: memref<4x128xf32, #tpu.memory_space<vmem>>, %arg4: memref<128x128xf32, #tpu.memory_space<vmem>>) attributes {dimension_semantics = [], scalar_prefetch = 0 : i64, scratch_operands = 0 : i64, tpu.core_type = #tpu.core_type<tc>} {
    %c0 = arith.constant 0 : index
    %c0_0 = arith.constant 0 : index
    %0 = vector.load %arg0[%c0, %c0_0] : memref<128x128xf32, #tpu.memory_space<vmem>>, vector<128x128xf32>
    %1 = arith.truncf %0 : vector<128x128xf32> to vector<128x128xbf16>
    %c0_1 = arith.constant 0 : index
    %c0_2 = arith.constant 0 : index
    %2 = vector.load %arg3[%c0_1, %c0_2] : memref<4x128xf32, #tpu.memory_space<vmem>>, vector<4x128xf32>
    %3 = vector.extract_strided_slice %2 {offsets = [0, 0], sizes = [1, 128], strides = [1, 1]} : vector<4x128xf32> to vector<1x128xf32>
    %4 = vector.extract_strided_slice %2 {offsets = [1, 0], sizes = [1, 128], strides = [1, 1]} : vector<4x128xf32> to vector<1x128xf32>
    %5 = vector.extract_strided_slice %2 {offsets = [2, 0], sizes = [1, 128], strides = [1, 1]} : vector<4x128xf32> to vector<1x128xf32>
    %6 = vector.extract_strided_slice %2 {offsets = [3, 0], sizes = [1, 128], strides = [1, 1]} : vector<4x128xf32> to vector<1x128xf32>
    %c0_3 = arith.constant 0 : index
    %c0_4 = arith.constant 0 : index
    %7 = vector.load %arg1[%c0_3, %c0_4] : memref<128x128xbf16, #tpu.memory_space<vmem>>, vector<128x128xbf16>
    %cst = arith.constant dense<0.000000e+00> : vector<128x128xf32>
    %8 = tpu.matmul %1, %7, %cst {dimension_numbers = #tpu.dot_dimension_numbers<[1], [0], [0], [1], [0, 0, 1, 1], [], []>} : vector<128x128xbf16>, vector<128x128xbf16>, vector<128x128xf32> -> vector<128x128xf32>
    %cst_5 = arith.constant dense<0.000000e+00> : vector<128xf32>
    %9 = vector.multi_reduction <add>, %8, %cst_5 [0] : vector<128x128xf32> to vector<128xf32>
    %10 = vector.shape_cast %9 : vector<128xf32> to vector<1x128xf32>
    %cst_6 = arith.constant 1.280000e+02 : f32
    %11 = vector.broadcast %cst_6 : f32 to vector<1x128xf32>
    %12 = arith.divf %10, %11 : vector<1x128xf32>
    %13 = vector.broadcast %12 : vector<1x128xf32> to vector<128x128xf32>
    %14 = arith.subf %8, %13 : vector<128x128xf32>
    %15 = arith.mulf %14, %14 : vector<128x128xf32>
    %cst_7 = arith.constant dense<0.000000e+00> : vector<128xf32>
    %16 = vector.multi_reduction <add>, %15, %cst_7 [0] : vector<128x128xf32> to vector<128xf32>
    %17 = vector.shape_cast %16 : vector<128xf32> to vector<1x128xf32>
    %cst_8 = arith.constant 1.280000e+02 : f32
    %18 = vector.broadcast %cst_8 : f32 to vector<1x128xf32>
    %19 = arith.divf %17, %18 : vector<1x128xf32>
    %cst_9 = arith.constant 9.99999974E-6 : f32
    %20 = vector.broadcast %cst_9 : f32 to vector<1x128xf32>
    %21 = arith.addf %19, %20 : vector<1x128xf32>
    %22 = math.rsqrt %21 : vector<1x128xf32>
    %23 = arith.mulf %3, %22 : vector<1x128xf32>
    %24 = vector.broadcast %23 : vector<1x128xf32> to vector<128x128xf32>
    %25 = arith.mulf %14, %24 : vector<128x128xf32>
    %26 = vector.broadcast %4 : vector<1x128xf32> to vector<128x128xf32>
    %27 = arith.addf %25, %26 : vector<128x128xf32>
    %cst_10 = arith.constant 0.000000e+00 : f32
    %28 = vector.broadcast %cst_10 : f32 to vector<128x128xf32>
    %29 = arith.maximumf %27, %28 : vector<128x128xf32>
    %30 = arith.truncf %29 : vector<128x128xf32> to vector<128x128xbf16>
    %c0_11 = arith.constant 0 : index
    %c0_12 = arith.constant 0 : index
    %31 = vector.load %arg2[%c0_11, %c0_12] : memref<128x128xbf16, #tpu.memory_space<vmem>>, vector<128x128xbf16>
    %cst_13 = arith.constant dense<0.000000e+00> : vector<128x128xf32>
    %32 = tpu.matmul %30, %31, %cst_13 {dimension_numbers = #tpu.dot_dimension_numbers<[1], [0], [0], [1], [0, 0, 1, 1], [], []>} : vector<128x128xbf16>, vector<128x128xbf16>, vector<128x128xf32> -> vector<128x128xf32>
    %cst_14 = arith.constant dense<0.000000e+00> : vector<128xf32>
    %33 = vector.multi_reduction <add>, %32, %cst_14 [0] : vector<128x128xf32> to vector<128xf32>
    %34 = vector.shape_cast %33 : vector<128xf32> to vector<1x128xf32>
    %cst_15 = arith.constant 1.280000e+02 : f32
    %35 = vector.broadcast %cst_15 : f32 to vector<1x128xf32>
    %36 = arith.divf %34, %35 : vector<1x128xf32>
    %37 = vector.broadcast %36 : vector<1x128xf32> to vector<128x128xf32>
    %38 = arith.subf %32, %37 : vector<128x128xf32>
    %39 = arith.mulf %38, %38 : vector<128x128xf32>
    %cst_16 = arith.constant dense<0.000000e+00> : vector<128xf32>
    %40 = vector.multi_reduction <add>, %39, %cst_16 [0] : vector<128x128xf32> to vector<128xf32>
    %41 = vector.shape_cast %40 : vector<128xf32> to vector<1x128xf32>
    %cst_17 = arith.constant 1.280000e+02 : f32
    %42 = vector.broadcast %cst_17 : f32 to vector<1x128xf32>
    %43 = arith.divf %41, %42 : vector<1x128xf32>
    %cst_18 = arith.constant 9.99999974E-6 : f32
    %44 = vector.broadcast %cst_18 : f32 to vector<1x128xf32>
    %45 = arith.addf %43, %44 : vector<1x128xf32>
    %46 = math.rsqrt %45 : vector<1x128xf32>
    %47 = arith.mulf %5, %46 : vector<1x128xf32>
    %48 = vector.broadcast %47 : vector<1x128xf32> to vector<128x128xf32>
    %49 = arith.mulf %38, %48 : vector<128x128xf32>
    %50 = vector.broadcast %6 : vector<1x128xf32> to vector<128x128xf32>
    %51 = arith.addf %49, %50 : vector<128x128xf32>
    %52 = arith.addf %51, %0 : vector<128x128xf32>
    %cst_19 = arith.constant 0.000000e+00 : f32
    %53 = vector.broadcast %cst_19 : f32 to vector<128x128xf32>
    %54 = arith.maximumf %52, %53 : vector<128x128xf32>
    %c0_20 = arith.constant 0 : index
    %c0_21 = arith.constant 0 : index
    %55 = vector.load %arg4[%c0_20, %c0_21] : memref<128x128xf32, #tpu.memory_space<vmem>>, vector<128x128xf32>
    tpu.vector_store %arg4[%c0_20, %c0_21], %54 {strides = array<i32>} : memref<128x128xf32, #tpu.memory_space<vmem>>, vector<128x128xf32>,
    return
  }
}

</mosaic_0001>

<llo_original>
// kernel: tpu_custom_call.1
$region0: #{tpu_custom_call.1}
  #allocation0 [shape = 'u32[]', space=smem, size = 0x4, offset = 0x4, fixed_abs, tag = 'smem constant byte address 0x4 - core index']
  #allocation1 [shape = 'u32[144,128]{1,0:T(1,128)}', space=vmem, size = 0x12000, scoped, tag = 'internal scratch']
  %s0 = inlined_call_operand.hbm [shape: f32[128,128], index: 0, kind: input, shape index: {}]
  %s1 = inlined_call_operand.hbm [shape: bf16[128,128], index: 1, kind: input, shape index: {}]
  %s2 = inlined_call_operand.hbm [shape: bf16[128,128], index: 2, kind: input, shape index: {}]
  %s3 = inlined_call_operand.vmem [shape: f32[4,128], index: 3, kind: input, shape index: {}]
  %s4 = inlined_call_operand.hbm [shape: f32[128,128], index: 4, kind: output, shape index: {}]
  %s5 = sld [smem:[#allocation0]]
  $region38: #{tpu_custom_call.1} parent=0
    _
  %s7 = ssub.s32 1, %s5
  %s8 = scalar_select 0, %s7, %s5
  $region1: #{tpu_custom_call.1} parent=0
    #allocation2 [shape = 'u8[65536]{0}', space=vmem, size = 0x10000, scoped, tag = 'input window, operand 0, single buffered']
    #allocation3 [shape = 's32[1]{0}', space=sflag, size = 0x4, scoped, tag = 'scoped memory for tpu_custom_call.1']
    #allocation4 [shape = 's32[1]{0}', space=sflag, size = 0x4, scoped, tag = 'scoped memory for tpu_custom_call.1']
    #allocation5 [shape = 'u8[32768]{0}', space=vmem, size = 0x8000, scoped, tag = 'input window, operand 1, single buffered']
    #allocation6 [shape = 's32[1]{0}', space=sflag, size = 0x4, scoped, tag = 'scoped memory for tpu_custom_call.1']
    #allocation7 [shape = 'u8[32768]{0}', space=vmem, size = 0x8000, scoped, tag = 'input window, operand 2, single buffered']
    #allocation8 [shape = 'u8[65536]{0}', space=vmem, size = 0x10000, scoped, tag = 'output window, operand 0, single buffered']
    %9 = vsyncpa [#allocation3], 0
    %10 = vsyncpa [#allocation6], 0
    %11 = vsyncpa [#allocation4], 0
    // Predicated region
    $region2: #{tpu_custom_call.1} parent=1 // pred_check
      _
    $region3: #{tpu_custom_call.1} parent=1 // pred_check_branch
      %13 = sbr.rel (0) target = $region5
    $region4: #{tpu_custom_call.1} parent=1 // pred_region
      %s15 = ssub.s32 2048, 2048
      %16 = vsyncadd [#allocation3], %s15
      %s17 = sshll.u32 [#allocation2], 4
      %s18 = int_to_ptr.vmem [resolvable:$true] %s17
      %23 = dma.hbm_to_vmem [thread:$0]  %s0, 2048, %s18, [#allocation3], 128, 128, 8
    $region5: #{tpu_custom_call.1} parent=1 // pred_fallthru
      _
    // Predicated region
    $region6: #{tpu_custom_call.1} parent=1 // pred_check
      _
    $region7: #{tpu_custom_call.1} parent=1 // pred_check_branch
      %25 = sbr.rel (0) target = $region9
    $region8: #{tpu_custom_call.1} parent=1 // pred_region
      %s27 = ssub.s32 1024, 1024
      %28 = vsyncadd [#allocation6], %s27
      %s29 = sshll.u32 [#allocation5], 4
      %s30 = int_to_ptr.vmem [resolvable:$true] %s29
      %35 = dma.hbm_to_vmem [thread:$0]  %s1, 1024, %s30, [#allocation6], 64, 64, 4
    $region9: #{tpu_custom_call.1} parent=1 // pred_fallthru
      _
    // Predicated region
    $region10: #{tpu_custom_call.1} parent=1 // pred_check
      _
    $region11: #{tpu_custom_call.1} parent=1 // pred_check_branch
      %37 = sbr.rel (0) target = $region13
    $region12: #{tpu_custom_call.1} parent=1 // pred_region
      %s39 = ssub.s32 1024, 1024
      %40 = vsyncadd [#allocation6], %s39
      %s41 = sshll.u32 [#allocation7], 4
      %s42 = int_to_ptr.vmem [resolvable:$true] %s41
      %47 = dma.hbm_to_vmem [thread:$0]  %s2, 1024, %s42, [#allocation6], 64, 64, 4
    $region13: #{tpu_custom_call.1} parent=1 // pred_fallthru
      _
    // Predicated region
    $region14: #{tpu_custom_call.1} parent=1 // pred_check
      _
    $region15: #{tpu_custom_call.1} parent=1 // pred_check_branch
      %49 = sbr.rel (0) target = $region17
    $region16: #{tpu_custom_call.1} parent=1 // pred_region
      _
    $region17: #{tpu_custom_call.1} parent=1 // pred_fallthru
      _
    // Predicated region
    $region18: #{tpu_custom_call.1} parent=1 // pred_check
      _
    $region19: #{tpu_custom_call.1} parent=1 // pred_check_branch
      %51 = sbr.rel (0) target = $region21
    $region20: #{tpu_custom_call.1} parent=1 // pred_region
      %52 = dma.done [#allocation3], 2048
    $region21: #{tpu_custom_call.1} parent=1 // pred_fallthru
      _
    // Predicated region
    $region22: #{tpu_custom_call.1} parent=1 // pred_check
      _
    $region23: #{tpu_custom_call.1} parent=1 // pred_check_branch
      %54 = sbr.rel (0) target = $region25
    $region24: #{tpu_custom_call.1} parent=1 // pred_region
      %55 = dma.done [#allocation6], 1024
    $region25: #{tpu_custom_call.1} parent=1 // pred_fallthru
      _
    // Predicated region
    $region26: #{tpu_custom_call.1} parent=1 // pred_check
      _
    $region27: #{tpu_custom_call.1} parent=1 // pred_check_branch
      %57 = sbr.rel (0) target = $region29
    $region28: #{tpu_custom_call.1} parent=1 // pred_region
      %58 = dma.done [#allocation6], 1024
    $region29: #{tpu_custom_call.1} parent=1 // pred_fallthru
      _
    %v60 = vld [vmem:[#allocation2] sm:$0xff]
    %v61 = vld [vmem:[#allocation2 + $0x8] sm:$0xff]
    %v62 = vld [vmem:[#allocation2 + $0x10] sm:$0xff]
    %v63 = vld [vmem:[#allocation2 + $0x18] sm:$0xff]
    %v64 = vld [vmem:[#allocation2 + $0x20] sm:$0xff]
    %v65 = vld [vmem:[#allocation2 + $0x28] sm:$0xff]
    %v66 = vld [vmem:[#allocation2 + $0x30] sm:$0xff]
    %v67 = vld [vmem:[#allocation2 + $0x38] sm:$0xff]
    %v68 = vld [vmem:[#allocation2 + $0x40] sm:$0xff]
    %v69 = vld [vmem:[#allocation2 + $0x48] sm:$0xff]
    %v70 = vld [vmem:[#allocation2 + $0x50] sm:$0xff]
    %v71 = vld [vmem:[#allocation2 + $0x58] sm:$0xff]
    %v72 = vld [vmem:[#allocation2 + $0x60] sm:$0xff]
    %v73 = vld [vmem:[#allocation2 + $0x68] sm:$0xff]
    %v74 = vld [vmem:[#allocation2 + $0x70] sm:$0xff]
    %v75 = vld [vmem:[#allocation2 + $0x78] sm:$0xff]
    %v76 = vpack.c.bf16 %v61, %v60
    %v77 = vpack.c.bf16 %v63, %v62
    %v78 = vpack.c.bf16 %v65, %v64
    %v79 = vpack.c.bf16 %v67, %v66
    %v80 = vpack.c.bf16 %v69, %v68
    %v81 = vpack.c.bf16 %v71, %v70
    %v82 = vpack.c.bf16 %v73, %v72
    %v83 = vpack.c.bf16 %v75, %v74
    %v84 = vld [vmem:[%s3] sm:$0xf]
    %v85 = vld [vmem:[#allocation5] sm:$0xf]
    %v86 = vld [vmem:[#allocation5 + $0x4] sm:$0xf]
    %v87 = vld [vmem:[#allocation5 + $0x8] sm:$0xf]
    %v88 = vld [vmem:[#allocation5 + $0xc] sm:$0xf]
    %v89 = vld [vmem:[#allocation5 + $0x10] sm:$0xf]
    %v90 = vld [vmem:[#allocation5 + $0x14] sm:$0xf]
    %v91 = vld [vmem:[#allocation5 + $0x18] sm:$0xf]
    %v92 = vld [vmem:[#allocation5 + $0x1c] sm:$0xf]
    %v93 = vld [vmem:[#allocation5 + $0x20] sm:$0xf]
    %v94 = vld [vmem:[#allocation5 + $0x24] sm:$0xf]
    %v95 = vld [vmem:[#allocation5 + $0x28] sm:$0xf]
    %v96 = vld [vmem:[#allocation5 + $0x2c] sm:$0xf]
    %v97 = vld [vmem:[#allocation5 + $0x30] sm:$0xf]
    %v98 = vld [vmem:[#allocation5 + $0x34] sm:$0xf]
    %v99 = vld [vmem:[#allocation5 + $0x38] sm:$0xf]
    %v100 = vld [vmem:[#allocation5 + $0x3c] sm:$0xf]
    %v117 = vunpack.c.l.b16 %v85
    %v118 = vunpack.c.l.b16 %v86
    %v119 = vunpack.c.l.b16 %v87
    %v120 = vunpack.c.l.b16 %v88
    %v121 = vunpack.c.l.b16 %v89
    %v122 = vunpack.c.l.b16 %v90
    %v123 = vunpack.c.l.b16 %v91
    %v124 = vunpack.c.l.b16 %v92
    %v125 = vunpack.c.l.b16 %v93
    %v126 = vunpack.c.l.b16 %v94
    %v127 = vunpack.c.l.b16 %v95
    %v128 = vunpack.c.l.b16 %v96
    %v129 = vunpack.c.l.b16 %v97
    %v130 = vunpack.c.l.b16 %v98
    %v131 = vunpack.c.l.b16 %v99
    %v132 = vunpack.c.l.b16 %v100
    %v133 = vpack.c.b16 %v118, %v117
    %v134 = vpack.c.b16 %v120, %v119
    %v135 = vpack.c.b16 %v122, %v121
    %v136 = vpack.c.b16 %v124, %v123
    %v137 = vpack.c.b16 %v126, %v125
    %v138 = vpack.c.b16 %v128, %v127
    %v139 = vpack.c.b16 %v130, %v129
    %v140 = vpack.c.b16 %v132, %v131
    %149 = vmatprep.subr.bf16.mxu0 0
    %150 = vmatpush1.bf16.msra.mxu0 %v140
    %151 = vmatprep.subr.bf16.mxu0 0
    %152 = vmatpush1.bf16.msra.mxu0 %v139
    %153 = vmatprep.subr.bf16.mxu0 0
    %154 = vmatpush1.bf16.msra.mxu0 %v138
    %155 = vmatprep.subr.bf16.mxu0 0
    %156 = vmatpush1.bf16.msra.mxu0 %v137
    %157 = vmatprep.subr.bf16.mxu0 0
    %158 = vmatpush1.bf16.msra.mxu0 %v136
    %159 = vmatprep.subr.bf16.mxu0 0
    %160 = vmatpush1.bf16.msra.mxu0 %v135
    %161 = vmatprep.subr.bf16.mxu0 0
    %162 = vmatpush1.bf16.msra.mxu0 %v134
    %163 = vmatprep.subr.bf16.mxu0 0
    %164 = vmatpush1.bf16.msra.mxu0 %v133
    %165 = vmatprep.subr.bf16.mxu0 0
    %166 = vmatpush2.bf16.msra.mxu0 0
    %167 = vmatprep.subr.bf16.mxu0 0
    %168 = vmatpush2.bf16.msra.mxu0 0
    %169 = vmatprep.subr.bf16.mxu0 0
    %170 = vmatpush2.bf16.msra.mxu0 0
    %171 = vmatprep.subr.bf16.mxu0 0
    %172 = vmatpush2.bf16.msra.mxu0 0
    %173 = vmatprep.subr.bf16.mxu0 0
    %174 = vmatpush2.bf16.msra.mxu0 0
    %175 = vmatprep.subr.bf16.mxu0 0
    %176 = vmatpush2.bf16.msra.mxu0 0
    %177 = vmatprep.subr.bf16.mxu0 0
    %178 = vmatpush2.bf16.msra.mxu0 0
    %179 = vmatprep.subr.bf16.mxu0 0
    %180 = vmatpush2.bf16.msra.mxu0 0
    %181 = vmatprep.mubr.bf16.mxu0 0
    %182 = vmatmul.mubr.bf16.gmra.mxu0 %v76
    %v183 = vpop.f32.mrf.mxu0
    %v184 = vadd.f32 0.0, %v183
    %v185 = vpop.f32.mrf.mxu0
    %v186 = vpop.f32.mrf.mxu0
    %v187 = vadd.f32 0.0, %v186
    %v188 = vpop.f32.mrf.mxu0
    %189 = vmatprep.mubr.bf16.mxu0 0
    %190 = vmatmul.mubr.bf16.gmra.mxu0 %v77
    %v191 = vpop.f32.mrf.mxu0
    %v192 = vadd.f32 0.0, %v191
    %v193 = vpop.f32.mrf.mxu0
    %v194 = vpop.f32.mrf.mxu0
    %v195 = vadd.f32 0.0, %v194
    %v196 = vpop.f32.mrf.mxu0
    %197 = vmatprep.mubr.bf16.mxu0 0
    %198 = vmatmul.mubr.bf16.gmra.mxu0 %v78
    %v199 = vpop.f32.mrf.mxu0
    %v200 = vadd.f32 0.0, %v199
    %v201 = vpop.f32.mrf.mxu0
    %v202 = vpop.f32.mrf.mxu0
    %v203 = vadd.f32 0.0, %v202
    %v204 = vpop.f32.mrf.mxu0
    %205 = vmatprep.mubr.bf16.mxu0 0
    %206 = vmatmul.mubr.bf16.gmra.mxu0 %v79
    %v207 = vpop.f32.mrf.mxu0
    %v208 = vadd.f32 0.0, %v207
    %v209 = vpop.f32.mrf.mxu0
    %v210 = vpop.f32.mrf.mxu0
    %v211 = vadd.f32 0.0, %v210
    %v212 = vpop.f32.mrf.mxu0
    %213 = vmatprep.mubr.bf16.mxu0 0
    %214 = vmatmul.mubr.bf16.gmra.mxu0 %v80
    %v215 = vpop.f32.mrf.mxu0
    %v216 = vadd.f32 0.0, %v215
    %v217 = vpop.f32.mrf.mxu0
    %v218 = vpop.f32.mrf.mxu0
    %v219 = vadd.f32 0.0, %v218
    %v220 = vpop.f32.mrf.mxu0
    %221 = vmatprep.mubr.bf16.mxu0 0
    %222 = vmatmul.mubr.bf16.gmra.mxu0 %v81
    %v223 = vpop.f32.mrf.mxu0
    %v224 = vadd.f32 0.0, %v223
    %v225 = vpop.f32.mrf.mxu0
    %v226 = vpop.f32.mrf.mxu0
    %v227 = vadd.f32 0.0, %v226
    %v228 = vpop.f32.mrf.mxu0
    %229 = vmatprep.mubr.bf16.mxu0 0
    %230 = vmatmul.mubr.bf16.gmra.mxu0 %v82
    %v231 = vpop.f32.mrf.mxu0
    %v232 = vadd.f32 0.0, %v231
    %v233 = vpop.f32.mrf.mxu0
    %v234 = vpop.f32.mrf.mxu0
    %v235 = vadd.f32 0.0, %v234
    %v236 = vpop.f32.mrf.mxu0
    %237 = vmatprep.mubr.bf16.mxu0 0
    %238 = vmatmul.mubr.bf16.gmra.mxu0 %v83
    %v239 = vpop.f32.mrf.mxu0
    %v240 = vadd.f32 0.0, %v239
    %v241 = vpop.f32.mrf.mxu0
    %v242 = vpop.f32.mrf.mxu0
    %v243 = vadd.f32 0.0, %v242
    %v244 = vpop.f32.mrf.mxu0
    %245 = vdwg.mxu0
    %v246 = vadd.f32 %v184, %v187
    %v247 = vadd.f32 %v246, %v192
    %v248 = vadd.f32 %v247, %v195
    %v249 = vadd.f32 %v248, %v200
    %v250 = vadd.f32 %v249, %v203
    %v251 = vadd.f32 %v250, %v208
    %v252 = vadd.f32 %v251, %v211
    %v253 = vadd.f32 %v252, %v216
    %v254 = vadd.f32 %v253, %v219
    %v255 = vadd.f32 %v254, %v224
    %v256 = vadd.f32 %v255, %v227
    %v257 = vadd.f32 %v256, %v232
    %v258 = vadd.f32 %v257, %v235
    %v259 = vadd.f32 %v258, %v240
    %v260 = vadd.f32 %v259, %v243
    %v261 = vrot.slane %v260, 4
    %v262 = vadd.f32 %v260, %v261
    %v263 = vrot.slane %v262, 2
    %v264 = vadd.f32 %v262, %v263
    %v265 = vrot.slane %v264, 1
    %v266 = vadd.f32 %v264, %v265
    %v267 = vrcp.pop 128.0
    %v268 = vmul.f32 %v266, %v267
    %v269 = vsub.f32 %v184, %v268
    %v270 = vsub.f32 %v187, %v268
    %v271 = vsub.f32 %v192, %v268
    %v272 = vsub.f32 %v195, %v268
    %v273 = vsub.f32 %v200, %v268
    %v274 = vsub.f32 %v203, %v268
    %v275 = vsub.f32 %v208, %v268
    %v276 = vsub.f32 %v211, %v268
    %v277 = vsub.f32 %v216, %v268
    %v278 = vsub.f32 %v219, %v268
    %v279 = vsub.f32 %v224, %v268
    %v280 = vsub.f32 %v227, %v268
    %v281 = vsub.f32 %v232, %v268
    %v282 = vsub.f32 %v235, %v268
    %v283 = vsub.f32 %v240, %v268
    %v284 = vsub.f32 %v243, %v268
    %v285 = vmul.f32 %v269, %v269
    %v286 = vmul.f32 %v270, %v270
    %v287 = vmul.f32 %v271, %v271
    %v288 = vmul.f32 %v272, %v272
    %v289 = vmul.f32 %v273, %v273
    %v290 = vmul.f32 %v274, %v274
    %v291 = vmul.f32 %v275, %v275
    %v292 = vmul.f32 %v276, %v276
    %v293 = vmul.f32 %v277, %v277
    %v294 = vmul.f32 %v278, %v278
    %v295 = vmul.f32 %v279, %v279
    %v296 = vmul.f32 %v280, %v280
    %v297 = vmul.f32 %v281, %v281
    %v298 = vmul.f32 %v282, %v282
    %v299 = vmul.f32 %v283, %v283
    %v300 = vmul.f32 %v284, %v284
    %v301 = vadd.f32 %v285, %v286
    %v302 = vadd.f32 %v301, %v287
    %v303 = vadd.f32 %v302, %v288
    %v304 = vadd.f32 %v303, %v289
    %v305 = vadd.f32 %v304, %v290
    %v306 = vadd.f32 %v305, %v291
    %v307 = vadd.f32 %v306, %v292
    %v308 = vadd.f32 %v307, %v293
    %v309 = vadd.f32 %v308, %v294
    %v310 = vadd.f32 %v309, %v295
    %v311 = vadd.f32 %v310, %v296
    %v312 = vadd.f32 %v311, %v297
    %v313 = vadd.f32 %v312, %v298
    %v314 = vadd.f32 %v313, %v299
    %v315 = vadd.f32 %v314, %v300
    %v316 = vrot.slane %v315, 4
    %v317 = vadd.f32 %v315, %v316
    %v318 = vrot.slane %v317, 2
    %v319 = vadd.f32 %v317, %v318
    %v320 = vrot.slane %v319, 1
    %v321 = vadd.f32 %v319, %v320
    %v322 = vmul.f32 %v321, %v267
    %v323 = vadd.f32 %v322, 1e-05
    %v324 = vrsqrt.pop %v323
    %v325 = vmul.f32 %v84, %v324
    %v326 = vlaneseq
    %v327 = vshrl.u32 %v326, 7
    %v328 = vsub.s32 0, %v327
    %v329 = vrot.slane %v325, %v328
    %v330 = vmul.f32 %v269, %v329
    %v331 = vmul.f32 %v270, %v329
    %v332 = vmul.f32 %v271, %v329
    %v333 = vmul.f32 %v272, %v329
    %v334 = vmul.f32 %v273, %v329
    %v335 = vmul.f32 %v274, %v329
    %v336 = vmul.f32 %v275, %v329
    %v337 = vmul.f32 %v276, %v329
    %v338 = vmul.f32 %v277, %v329
    %v339 = vmul.f32 %v278, %v329
    %v340 = vmul.f32 %v279, %v329
    %v341 = vmul.f32 %v280, %v329
    %v342 = vmul.f32 %v281, %v329
    %v343 = vmul.f32 %v282, %v329
    %v344 = vmul.f32 %v283, %v329
    %v345 = vmul.f32 %v284, %v329
    %v346 = vlaneseq
    %v347 = vshrl.u32 %v346, 7
    %v348 = vsub.s32 1, %v347
    %v349 = vrot.slane %v84, %v348
    %v350 = vadd.f32 %v330, %v349
    %v351 = vadd.f32 %v331, %v349
    %v352 = vadd.f32 %v332, %v349
    %v353 = vadd.f32 %v333, %v349
    %v354 = vadd.f32 %v334, %v349
    %v355 = vadd.f32 %v335, %v349
    %v356 = vadd.f32 %v336, %v349
    %v357 = vadd.f32 %v337, %v349
    %v358 = vadd.f32 %v338, %v349
    %v359 = vadd.f32 %v339, %v349
    %v360 = vadd.f32 %v340, %v349
    %v361 = vadd.f32 %v341, %v349
    %v362 = vadd.f32 %v342, %v349
    %v363 = vadd.f32 %v343, %v349
    %v364 = vadd.f32 %v344, %v349
    %v365 = vadd.f32 %v345, %v349
    %v366 = vmax.f32 %v350, 0.0
    %v367 = vmax.f32 %v351, 0.0
    %v368 = vmax.f32 %v352, 0.0
    %v369 = vmax.f32 %v353, 0.0
    %v370 = vmax.f32 %v354, 0.0
    %v371 = vmax.f32 %v355, 0.0
    %v372 = vmax.f32 %v356, 0.0
    %v373 = vmax.f32 %v357, 0.0
    %v374 = vmax.f32 %v358, 0.0
    %v375 = vmax.f32 %v359, 0.0
    %v376 = vmax.f32 %v360, 0.0
    %v377 = vmax.f32 %v361, 0.0
    %v378 = vmax.f32 %v362, 0.0
    %v379 = vmax.f32 %v363, 0.0
    %v380 = vmax.f32 %v364, 0.0
    %v381 = vmax.f32 %v365, 0.0
    %v382 = vpack.c.bf16 %v367, %v366
    %v383 = vpack.c.bf16 %v369, %v368
    %v384 = vpack.c.bf16 %v371, %v370
    %v385 = vpack.c.bf16 %v373, %v372
    %v386 = vpack.c.bf16 %v375, %v374
    %v387 = vpack.c.bf16 %v377, %v376
    %v388 = vpack.c.bf16 %v379, %v378
    %v389 = vpack.c.bf16 %v381, %v380
    %v390 = vld [vmem:[#allocation7] sm:$0xf]
    %v391 = vld [vmem:[#allocation7 + $0x4] sm:$0xf]
    %v392 = vld [vmem:[#allocation7 + $0x8] sm:$0xf]
    %v393 = vld [vmem:[#allocation7 + $0xc] sm:$0xf]
    %v394 = vld [vmem:[#allocation7 + $0x10] sm:$0xf]
    %v395 = vld [vmem:[#allocation7 + $0x14] sm:$0xf]
    %v396 = vld [vmem:[#allocation7 + $0x18] sm:$0xf]
    %v397 = vld [vmem:[#allocation7 + $0x1c] sm:$0xf]
    %v398 = vld [vmem:[#allocation7 + $0x20] sm:$0xf]
    %v399 = vld [vmem:[#allocation7 + $0x24] sm:$0xf]
    %v400 = vld [vmem:[#allocation7 + $0x28] sm:$0xf]
    %v401 = vld [vmem:[#allocation7 + $0x2c] sm:$0xf]
    %v402 = vld [vmem:[#allocation7 + $0x30] sm:$0xf]
    %v403 = vld [vmem:[#allocation7 + $0x34] sm:$0xf]
    %v404 = vld [vmem:[#allocation7 + $0x38] sm:$0xf]
    %v405 = vld [vmem:[#allocation7 + $0x3c] sm:$0xf]
    %v422 = vunpack.c.l.b16 %v390
    %v423 = vunpack.c.l.b16 %v391
    %v424 = vunpack.c.l.b16 %v392
    %v425 = vunpack.c.l.b16 %v393
    %v426 = vunpack.c.l.b16 %v394
    %v427 = vunpack.c.l.b16 %v395
    %v428 = vunpack.c.l.b16 %v396
    %v429 = vunpack.c.l.b16 %v397
    %v430 = vunpack.c.l.b16 %v398
    %v431 = vunpack.c.l.b16 %v399
    %v432 = vunpack.c.l.b16 %v400
    %v433 = vunpack.c.l.b16 %v401
    %v434 = vunpack.c.l.b16 %v402
    %v435 = vunpack.c.l.b16 %v403
    %v436 = vunpack.c.l.b16 %v404
    %v437 = vunpack.c.l.b16 %v405
    %v438 = vpack.c.b16 %v423, %v422
    %v439 = vpack.c.b16 %v425, %v424
    %v440 = vpack.c.b16 %v427, %v426
    %v441 = vpack.c.b16 %v429, %v428
    %v442 = vpack.c.b16 %v431, %v430
    %v443 = vpack.c.b16 %v433, %v432
    %v444 = vpack.c.b16 %v435, %v434
    %v445 = vpack.c.b16 %v437, %v436
    %454 = vmatprep.subr.bf16.mxu0 0
    %455 = vmatpush1.bf16.msra.mxu0 %v445
    %456 = vmatprep.subr.bf16.mxu0 0
    %457 = vmatpush1.bf16.msra.mxu0 %v444
    %458 = vmatprep.subr.bf16.mxu0 0
    %459 = vmatpush1.bf16.msra.mxu0 %v443
    %460 = vmatprep.subr.bf16.mxu0 0
    %461 = vmatpush1.bf16.msra.mxu0 %v442
    %462 = vmatprep.subr.bf16.mxu0 0
    %463 = vmatpush1.bf16.msra.mxu0 %v441
    %464 = vmatprep.subr.bf16.mxu0 0
    %465 = vmatpush1.bf16.msra.mxu0 %v440
    %466 = vmatprep.subr.bf16.mxu0 0
    %467 = vmatpush1.bf16.msra.mxu0 %v439
    %468 = vmatprep.subr.bf16.mxu0 0
    %469 = vmatpush1.bf16.msra.mxu0 %v438
    %470 = vmatprep.subr.bf16.mxu0 0
    %471 = vmatpush2.bf16.msra.mxu0 0
    %472 = vmatprep.subr.bf16.mxu0 0
    %473 = vmatpush2.bf16.msra.mxu0 0
    %474 = vmatprep.subr.bf16.mxu0 0
    %475 = vmatpush2.bf16.msra.mxu0 0
    %476 = vmatprep.subr.bf16.mxu0 0
    %477 = vmatpush2.bf16.msra.mxu0 0
    %478 = vmatprep.subr.bf16.mxu0 0
    %479 = vmatpush2.bf16.msra.mxu0 0
    %480 = vmatprep.subr.bf16.mxu0 0
    %481 = vmatpush2.bf16.msra.mxu0 0
    %482 = vmatprep.subr.bf16.mxu0 0
    %483 = vmatpush2.bf16.msra.mxu0 0
    %484 = vmatprep.subr.bf16.mxu0 0
    %485 = vmatpush2.bf16.msra.mxu0 0
    %486 = vmatprep.mubr.bf16.mxu0 0
    %487 = vmatmul.mubr.bf16.gmra.mxu0 %v382
    %v488 = vpop.f32.mrf.mxu0
    %v489 = vadd.f32 0.0, %v488
    %v490 = vpop.f32.mrf.mxu0
    %v491 = vpop.f32.mrf.mxu0
    %v492 = vadd.f32 0.0, %v491
    %v493 = vpop.f32.mrf.mxu0
    %494 = vmatprep.mubr.bf16.mxu0 0
    %495 = vmatmul.mubr.bf16.gmra.mxu0 %v383
    %v496 = vpop.f32.mrf.mxu0
    %v497 = vadd.f32 0.0, %v496
    %v498 = vpop.f32.mrf.mxu0
    %v499 = vpop.f32.mrf.mxu0
    %v500 = vadd.f32 0.0, %v499
    %v501 = vpop.f32.mrf.mxu0
    %502 = vmatprep.mubr.bf16.mxu0 0
    %503 = vmatmul.mubr.bf16.gmra.mxu0 %v384
    %v504 = vpop.f32.mrf.mxu0
    %v505 = vadd.f32 0.0, %v504
    %v506 = vpop.f32.mrf.mxu0
    %v507 = vpop.f32.mrf.mxu0
    %v508 = vadd.f32 0.0, %v507
    %v509 = vpop.f32.mrf.mxu0
    %510 = vmatprep.mubr.bf16.mxu0 0
    %511 = vmatmul.mubr.bf16.gmra.mxu0 %v385
    %v512 = vpop.f32.mrf.mxu0
    %v513 = vadd.f32 0.0, %v512
    %v514 = vpop.f32.mrf.mxu0
    %v515 = vpop.f32.mrf.mxu0
    %v516 = vadd.f32 0.0, %v515
    %v517 = vpop.f32.mrf.mxu0
    %518 = vmatprep.mubr.bf16.mxu0 0
    %519 = vmatmul.mubr.bf16.gmra.mxu0 %v386
    %v520 = vpop.f32.mrf.mxu0
    %v521 = vadd.f32 0.0, %v520
    %v522 = vpop.f32.mrf.mxu0
    %v523 = vpop.f32.mrf.mxu0
    %v524 = vadd.f32 0.0, %v523
    %v525 = vpop.f32.mrf.mxu0
    %526 = vmatprep.mubr.bf16.mxu0 0
    %527 = vmatmul.mubr.bf16.gmra.mxu0 %v387
    %v528 = vpop.f32.mrf.mxu0
    %v529 = vadd.f32 0.0, %v528
    %v530 = vpop.f32.mrf.mxu0
    %v531 = vpop.f32.mrf.mxu0
    %v532 = vadd.f32 0.0, %v531
    %v533 = vpop.f32.mrf.mxu0
    %534 = vmatprep.mubr.bf16.mxu0 0
    %535 = vmatmul.mubr.bf16.gmra.mxu0 %v388
    %v536 = vpop.f32.mrf.mxu0
    %v537 = vadd.f32 0.0, %v536
    %v538 = vpop.f32.mrf.mxu0
    %v539 = vpop.f32.mrf.mxu0
    %v540 = vadd.f32 0.0, %v539
    %v541 = vpop.f32.mrf.mxu0
    %542 = vmatprep.mubr.bf16.mxu0 0
    %543 = vmatmul.mubr.bf16.gmra.mxu0 %v389
    %v544 = vpop.f32.mrf.mxu0
    %v545 = vadd.f32 0.0, %v544
    %v546 = vpop.f32.mrf.mxu0
    %v547 = vpop.f32.mrf.mxu0
    %v548 = vadd.f32 0.0, %v547
    %v549 = vpop.f32.mrf.mxu0
    %550 = vdwg.mxu0
    %v551 = vadd.f32 %v489, %v492
    %v552 = vadd.f32 %v551, %v497
    %v553 = vadd.f32 %v552, %v500
    %v554 = vadd.f32 %v553, %v505
    %v555 = vadd.f32 %v554, %v508
    %v556 = vadd.f32 %v555, %v513
    %v557 = vadd.f32 %v556, %v516
    %v558 = vadd.f32 %v557, %v521
    %v559 = vadd.f32 %v558, %v524
    %v560 = vadd.f32 %v559, %v529
    %v561 = vadd.f32 %v560, %v532
    %v562 = vadd.f32 %v561, %v537
    %v563 = vadd.f32 %v562, %v540
    %v564 = vadd.f32 %v563, %v545
    %v565 = vadd.f32 %v564, %v548
    %v566 = vrot.slane %v565, 4
    %v567 = vadd.f32 %v565, %v566
    %v568 = vrot.slane %v567, 2
    %v569 = vadd.f32 %v567, %v568
    %v570 = vrot.slane %v569, 1
    %v571 = vadd.f32 %v569, %v570
    %v572 = vmul.f32 %v571, %v267
    %v573 = vsub.f32 %v489, %v572
    %v574 = vsub.f32 %v492, %v572
    %v575 = vsub.f32 %v497, %v572
    %v576 = vsub.f32 %v500, %v572
    %v577 = vsub.f32 %v505, %v572
    %v578 = vsub.f32 %v508, %v572
    %v579 = vsub.f32 %v513, %v572
    %v580 = vsub.f32 %v516, %v572
    %v581 = vsub.f32 %v521, %v572
    %v582 = vsub.f32 %v524, %v572
    %v583 = vsub.f32 %v529, %v572
    %v584 = vsub.f32 %v532, %v572
    %v585 = vsub.f32 %v537, %v572
    %v586 = vsub.f32 %v540, %v572
    %v587 = vsub.f32 %v545, %v572
    %v588 = vsub.f32 %v548, %v572
    %v589 = vmul.f32 %v573, %v573
    %v590 = vmul.f32 %v574, %v574
    %v591 = vmul.f32 %v575, %v575
    %v592 = vmul.f32 %v576, %v576
    %v593 = vmul.f32 %v577, %v577
    %v594 = vmul.f32 %v578, %v578
    %v595 = vmul.f32 %v579, %v579
    %v596 = vmul.f32 %v580, %v580
    %v597 = vmul.f32 %v581, %v581
    %v598 = vmul.f32 %v582, %v582
    %v599 = vmul.f32 %v583, %v583
    %v600 = vmul.f32 %v584, %v584
    %v601 = vmul.f32 %v585, %v585
    %v602 = vmul.f32 %v586, %v586
    %v603 = vmul.f32 %v587, %v587
    %v604 = vmul.f32 %v588, %v588
    %v605 = vadd.f32 %v589, %v590
    %v606 = vadd.f32 %v605, %v591
    %v607 = vadd.f32 %v606, %v592
    %v608 = vadd.f32 %v607, %v593
    %v609 = vadd.f32 %v608, %v594
    %v610 = vadd.f32 %v609, %v595
    %v611 = vadd.f32 %v610, %v596
    %v612 = vadd.f32 %v611, %v597
    %v613 = vadd.f32 %v612, %v598
    %v614 = vadd.f32 %v613, %v599
    %v615 = vadd.f32 %v614, %v600
    %v616 = vadd.f32 %v615, %v601
    %v617 = vadd.f32 %v616, %v602
    %v618 = vadd.f32 %v617, %v603
    %v619 = vadd.f32 %v618, %v604
    %v620 = vrot.slane %v619, 4
    %v621 = vadd.f32 %v619, %v620
    %v622 = vrot.slane %v621, 2
    %v623 = vadd.f32 %v621, %v622
    %v624 = vrot.slane %v623, 1
    %v625 = vadd.f32 %v623, %v624
    %v626 = vmul.f32 %v625, %v267
    %v627 = vadd.f32 %v626, 1e-05
    %v628 = vrsqrt.pop %v627
    %v629 = vmul.f32 %v84, %v628
    %v630 = vlaneseq
    %v631 = vshrl.u32 %v630, 7
    %v632 = vsub.s32 2, %v631
    %v633 = vrot.slane %v629, %v632
    %v634 = vmul.f32 %v573, %v633
    %v635 = vmul.f32 %v574, %v633
    %v636 = vmul.f32 %v575, %v633
    %v637 = vmul.f32 %v576, %v633
    %v638 = vmul.f32 %v577, %v633
    %v639 = vmul.f32 %v578, %v633
    %v640 = vmul.f32 %v579, %v633
    %v641 = vmul.f32 %v580, %v633
    %v642 = vmul.f32 %v581, %v633
    %v643 = vmul.f32 %v582, %v633
    %v644 = vmul.f32 %v583, %v633
    %v645 = vmul.f32 %v584, %v633
    %v646 = vmul.f32 %v585, %v633
    %v647 = vmul.f32 %v586, %v633
    %v648 = vmul.f32 %v587, %v633
    %v649 = vmul.f32 %v588, %v633
    %v650 = vlaneseq
    %v651 = vshrl.u32 %v650, 7
    %v652 = vsub.s32 3, %v651
    %v653 = vrot.slane %v84, %v652
    %v654 = vadd.f32 %v634, %v653
    %v655 = vadd.f32 %v635, %v653
    %v656 = vadd.f32 %v636, %v653
    %v657 = vadd.f32 %v637, %v653
    %v658 = vadd.f32 %v638, %v653
    %v659 = vadd.f32 %v639, %v653
    %v660 = vadd.f32 %v640, %v653
    %v661 = vadd.f32 %v641, %v653
    %v662 = vadd.f32 %v642, %v653
    %v663 = vadd.f32 %v643, %v653
    %v664 = vadd.f32 %v644, %v653
    %v665 = vadd.f32 %v645, %v653
    %v666 = vadd.f32 %v646, %v653
    %v667 = vadd.f32 %v647, %v653
    %v668 = vadd.f32 %v648, %v653
    %v669 = vadd.f32 %v649, %v653
    %v670 = vadd.f32 %v654, %v60
    %v671 = vadd.f32 %v655, %v61
    %v672 = vadd.f32 %v656, %v62
    %v673 = vadd.f32 %v657, %v63
    %v674 = vadd.f32 %v658, %v64
    %v675 = vadd.f32 %v659, %v65
    %v676 = vadd.f32 %v660, %v66
    %v677 = vadd.f32 %v661, %v67
    %v678 = vadd.f32 %v662, %v68
    %v679 = vadd.f32 %v663, %v69
    %v680 = vadd.f32 %v664, %v70
    %v681 = vadd.f32 %v665, %v71
    %v682 = vadd.f32 %v666, %v72
    %v683 = vadd.f32 %v667, %v73
    %v684 = vadd.f32 %v668, %v74
    %v685 = vadd.f32 %v669, %v75
    %v686 = vmax.f32 %v670, 0.0
    %v687 = vmax.f32 %v671, 0.0
    %v688 = vmax.f32 %v672, 0.0
    %v689 = vmax.f32 %v673, 0.0
    %v690 = vmax.f32 %v674, 0.0
    %v691 = vmax.f32 %v675, 0.0
    %v692 = vmax.f32 %v676, 0.0
    %v693 = vmax.f32 %v677, 0.0
    %v694 = vmax.f32 %v678, 0.0
    %v695 = vmax.f32 %v679, 0.0
    %v696 = vmax.f32 %v680, 0.0
    %v697 = vmax.f32 %v681, 0.0
    %v698 = vmax.f32 %v682, 0.0
    %v699 = vmax.f32 %v683, 0.0
    %v700 = vmax.f32 %v684, 0.0
    %v701 = vmax.f32 %v685, 0.0
    %702 = vst [vmem:[#allocation8] sm:$0xff] %v686
    %703 = vst [vmem:[#allocation8 + $0x8] sm:$0xff] %v687
    %704 = vst [vmem:[#allocation8 + $0x10] sm:$0xff] %v688
    %705 = vst [vmem:[#allocation8 + $0x18] sm:$0xff] %v689
    %706 = vst [vmem:[#allocation8 + $0x20] sm:$0xff] %v690
    %707 = vst [vmem:[#allocation8 + $0x28] sm:$0xff] %v691
    %708 = vst [vmem:[#allocation8 + $0x30] sm:$0xff] %v692
    %709 = vst [vmem:[#allocation8 + $0x38] sm:$0xff] %v693
    %710 = vst [vmem:[#allocation8 + $0x40] sm:$0xff] %v694
    %711 = vst [vmem:[#allocation8 + $0x48] sm:$0xff] %v695
    %712 = vst [vmem:[#allocation8 + $0x50] sm:$0xff] %v696
    %713 = vst [vmem:[#allocation8 + $0x58] sm:$0xff] %v697
    %714 = vst [vmem:[#allocation8 + $0x60] sm:$0xff] %v698
    %715 = vst [vmem:[#allocation8 + $0x68] sm:$0xff] %v699
    %716 = vst [vmem:[#allocation8 + $0x70] sm:$0xff] %v700
    %717 = vst [vmem:[#allocation8 + $0x78] sm:$0xff] %v701
    // Predicated region
    $region30: #{tpu_custom_call.1} parent=1 // pred_check
      _
    $region31: #{tpu_custom_call.1} parent=1 // pred_check_branch
      %719 = sbr.rel (0) target = $region33
    $region32: #{tpu_custom_call.1} parent=1 // pred_region
      %s721 = ssub.s32 2048, 2048
      %722 = vsyncadd [#allocation4], %s721
      %s723 = sshll.u32 [#allocation8], 4
      %s724 = int_to_ptr.vmem [resolvable:$true] %s723
      %729 = dma.vmem_to_hbm [thread:$0]  %s724, 2048, %s4, [#allocation4], 128, 128, 8
    $region33: #{tpu_custom_call.1} parent=1 // pred_fallthru
      _
    // Predicated region
    $region34: #{tpu_custom_call.1} parent=1 // pred_check
      _
    $region35: #{tpu_custom_call.1} parent=1 // pred_check_branch
      %731 = sbr.rel (0) target = $region37
    $region36: #{tpu_custom_call.1} parent=1 // pred_region
      %732 = dma.done [#allocation4], 2048
    $region37: #{tpu_custom_call.1} parent=1 // pred_fallthru
      _
    %733 = vsyncpa [#allocation3], 1
    %734 = vsyncpa [#allocation6], 1
    %735 = vsyncpa [#allocation4], 1

</llo_original>
